<compile_context>
chip_gen: v7x
topology: tpu7x:2x2x1
jax: 0.10.0
libtpu: 0.0.40
codegen_flags: <defaults>
</compile_context>

<pallas_src>
import functools

import jax
import jax.numpy as jnp
from jax.experimental import pallas as pl
from jax.experimental.pallas import tpu as pltpu


def _round_up(x, m):
    return ((x + m - 1) // m) * m


# ---------------------------------------------------------------------------
# Kernels
# ---------------------------------------------------------------------------
def _fused_encoder_kernel(x_ref, w_ref, b_ref, o_ref):
    # Single fused affine map: y = x @ W + b  (one MXU push per batch tile).
    x = x_ref[...].astype(w_ref.dtype)               # no-op if dtypes match
    y = jnp.dot(x, w_ref[...], preferred_element_type=jnp.float32)
    y = y + b_ref[...]                               # f32 bias epilogue (VPU)
    o_ref[...] = y.astype(o_ref.dtype)


def _factored_encoder_kernel(x_ref, w12_ref, b12_ref, w3_ref, b3_ref, o_ref):
    # Factored form keeps the rank-`hidden` structure when the dense fused W
    # would be too large: y = (x @ (w1@w2) + b12) @ w3 + b3.
    x = x_ref[...].astype(w12_ref.dtype)
    h = jnp.dot(x, w12_ref[...], preferred_element_type=jnp.float32)
    h = h + b12_ref[...]
    y = jnp.dot(h.astype(w3_ref.dtype), w3_ref[...],
                preferred_element_type=jnp.float32)
    y = y + b3_ref[...]
    o_ref[...] = y.astype(o_ref.dtype)


# ---------------------------------------------------------------------------
# Parameter handling
# ---------------------------------------------------------------------------
def init_encoder_params(key, input_dim, encode_dim, hidden_dim=64):
    """Mimics nn.Linear's U(-1/sqrt(fan_in), 1/sqrt(fan_in)) init.
    Weights stored as (in_features, out_features) -- transposed vs PyTorch."""
    def linear(k, fan_in, fan_out):
        kw, kb = jax.random.split(k)
        bound = 1.0 / jnp.sqrt(fan_in)
        w = jax.random.uniform(kw, (fan_in, fan_out), jnp.float32,
                               minval=-bound, maxval=bound)
        b = jax.random.uniform(kb, (1, fan_out), jnp.float32,
                               minval=-bound, maxval=bound)
        return w, b

    k1, k2, k3 = jax.random.split(key, 3)
    w1, b1 = linear(k1, input_dim, hidden_dim)
    w2, b2 = linear(k2, hidden_dim, hidden_dim)
    w3, b3 = linear(k3, hidden_dim, encode_dim)
    return {"w1": w1, "b1": b1, "w2": w2, "b2": b2, "w3": w3, "b3": b3}


def fuse_encoder_params(params, compute_dtype=None, prefer_fused=None):
    """Fold the 3 bias-carrying linears (done ONCE, outside the kernel).

    compute_dtype: e.g. jnp.bfloat16 -> weights are cast & cached here (never
    inside the jitted wrapper); biases stay f32 for the epilogue.
    prefer_fused: None -> size heuristic; True/False to force a path.
    """
    w1, b1 = params["w1"], params["b1"]
    w2, b2 = params["w2"], params["b2"]
    w3, b3 = params["w3"], params["b3"]

    # First two layers always fold (hidden x hidden is tiny).
    w12 = w1 @ w2                      # (input_dim, hidden)
    b12 = b1 @ w2 + b2                 # (1, hidden)

    input_dim, hidden = w12.shape
    encode_dim = w3.shape[1]

    if prefer_fused is None:
        # Full fusion discards the rank-`hidden` structure; only fuse when the
        # dense (input_dim, encode_dim) W is not much bigger than the factored
        # chain (VMEM footprint, HBM bytes and FLOPs all scale with it).
        prefer_fused = (input_dim * encode_dim
                        <= 2 * (input_dim * hidden + hidden * encode_dim))

    if prefer_fused:
        w = w12 @ w3                   # (input_dim, encode_dim)
        b = b12 @ w3 + b3              # (1, encode_dim) -- stays f32
        if compute_dtype is not None:
            w = w.astype(compute_dtype)
        return {"w": w, "b": b}

    if compute_dtype is not None:
        w12 = w12.astype(compute_dtype)
        w3 = w3.astype(compute_dtype)
    return {"w12": w12, "b12": b12, "w3": w3, "b3": b3}


# ---------------------------------------------------------------------------
# Forward wrapper
# ---------------------------------------------------------------------------
@functools.partial(jax.jit, static_argnames=("tm", "out_dtype"))
def encoder_forward(x, fused, *, tm=2048, out_dtype=None):
    """x: (B, input_dim).  fused: output of fuse_encoder_params().
    out_dtype: defaults to x.dtype (set jnp.bfloat16 to halve output bytes)."""
    out_dtype = x.dtype if out_dtype is None else out_dtype
    B, K = x.shape

    # Batch tile: multiple of 8 sublanes, capped at tm rows.
    tm_eff = min(tm, _round_up(B, 8))
    # v7x has 2 TensorCores; if the whole batch fits in a single tile but can
    # be split into >=2 sublane-aligned tiles, split so both cores get work
    # (harmless no-op on single-core v5e/v6e).
    if pl.cdiv(B, tm_eff) == 1 and B >= 16:
        tm_eff = _round_up(pl.cdiv(B, 2), 8)
    grid = (pl.cdiv(B, tm_eff),)       # ragged last tile handled by masking

    if "w" in fused:
        # Fully fused single affine map.
        w, b = fused["w"], fused["b"]
        N = w.shape[1]
        kernel = _fused_encoder_kernel
        in_specs = [
            # x: one batch tile per grid step (pipelined DMA).
            pl.BlockSpec((tm_eff, K), lambda i: (i, 0)),
            # weight / bias: constant index_map -> VMEM-resident, DMA'd once.
            pl.BlockSpec((K, N), lambda i: (0, 0)),
            pl.BlockSpec((1, N), lambda i: (0, 0)),
        ]
        operands = (x, w, b)
        resident = w.size * w.dtype.itemsize + b.size * b.dtype.itemsize
    else:
        # Factored two-matmul chain (large input_dim*encode_dim case).
        w12, b12, w3, b3 = fused["w12"], fused["b12"], fused["w3"], fused["b3"]
        H = w12.shape[1]
        N = w3.shape[1]
        kernel = _factored_encoder_kernel
        in_specs = [
            pl.BlockSpec((tm_eff, K), lambda i: (i, 0)),
            pl.BlockSpec((K, H), lambda i: (0, 0)),
            pl.BlockSpec((1, H), lambda i: (0, 0)),
            pl.BlockSpec((H, N), lambda i: (0, 0)),
            pl.BlockSpec((1, N), lambda i: (0, 0)),
        ]
        operands = (x, w12, b12, w3, b3)
        resident = sum(a.size * a.dtype.itemsize for a in (w12, b12, w3, b3))

    # VMEM budget: double-buffered x/out tiles + resident weights + slack,
    # clamped to stay well under v7x's 64 MiB per-TC VMEM.
    tile_bytes = (tm_eff * K * x.dtype.itemsize
                  + tm_eff * N * jnp.dtype(out_dtype).itemsize)
    vmem_limit = int(min(max(2 * tile_bytes + resident + (2 << 20), 16 << 20),
                         48 << 20))

    return pl.pallas_call(
        kernel,
        out_shape=jax.ShapeDtypeStruct((B, N), out_dtype),
        grid=grid,
        in_specs=in_specs,
        # True encode_dim-wide output: no lane padding, no post-kernel slice.
        out_specs=pl.BlockSpec((tm_eff, N), lambda i: (i, 0)),
        compiler_params=pltpu.CompilerParams(
            dimension_semantics=("parallel",),   # shards tiles across v7x TCs
            vmem_limit_bytes=vmem_limit,
        ),
    )(*operands)


# ---------------------------------------------------------------------------
# Pure-JAX reference (unfused, matches the PyTorch module exactly)
# ---------------------------------------------------------------------------
def encoder_reference(x, p):
    h = x @ p["w1"] + p["b1"]
    h = h @ p["w2"] + p["b2"]
    return h @ p["w3"] + p["b3"]


if __name__ == "__main__":
    key = jax.random.PRNGKey(0)
    k_params, k_x, k_x2 = jax.random.split(key, 3)

    batch = 8
    input_dim = 32
    encode_dim = 16
    hidden_dim = 64

    params = init_encoder_params(k_params, input_dim, encode_dim, hidden_dim)
    x = jax.random.normal(k_x, (batch, input_dim), jnp.float32)
    ref = encoder_reference(x, params)

    # 1) fully fused f32 path.
    fused = fuse_encoder_params(params)
    out = jax.block_until_ready(encoder_forward(x, fused))
    assert out.shape == (batch, encode_dim), out.shape
    assert jnp.allclose(out, ref, atol=1e-4, rtol=1e-4), \
        float(jnp.max(jnp.abs(out - ref)))

    # 2) bf16 weights cached at fuse time; f32 accumulation + f32 bias epilogue.
    fused_bf16 = fuse_encoder_params(params, compute_dtype=jnp.bfloat16)
    out_bf16 = jax.block_until_ready(encoder_forward(x, fused_bf16))
    assert jnp.allclose(out_bf16, ref, atol=3e-2, rtol=3e-2), \
        float(jnp.max(jnp.abs(out_bf16 - ref)))

    # 3) factored path (what very large input/encode dims would select) with a
    #    ragged batch (20 rows, 8-row tiles -> masked last tile, no jnp.pad).
    batch2 = 20
    x2 = jax.random.normal(k_x2, (batch2, input_dim), jnp.float32)
    ref2 = encoder_reference(x2, params)
    factored = fuse_encoder_params(params, prefer_fused=False)
    out2 = jax.block_until_ready(encoder_forward(x2, factored, tm=8))
    assert out2.shape == (batch2, encode_dim), out2.shape
    assert jnp.allclose(out2, ref2, atol=1e-4, rtol=1e-4), \
        float(jnp.max(jnp.abs(out2 - ref2)))

    print("KERNEL_OK")
</pallas_src>

<mosaic_0001>
module attributes {stable_mosaic.version = 11 : i64} {
  func.func @_fused_encoder_kernel(%arg0: i32, %arg1: memref<8x32xf32, #tpu.memory_space<vmem>>, %arg2: memref<32x16xf32, #tpu.memory_space<vmem>>, %arg3: memref<1x16xf32, #tpu.memory_space<vmem>>, %arg4: memref<8x16xf32, #tpu.memory_space<vmem>>) attributes {dimension_semantics = [#tpu.dimension_semantics<parallel>], iteration_bounds = array<i64: 1>, scalar_prefetch = 0 : i64, scratch_operands = 0 : i64, tpu.core_type = #tpu.core_type<tc>, window_params = [{transform_indices = @transform_0, window_bounds = array<i64: 8, 32>}, {pipeline_mode = #tpu.pipeline_mode<synchronous>, transform_indices = @transform_1, window_bounds = array<i64: 32, 16>}, {pipeline_mode = #tpu.pipeline_mode<synchronous>, transform_indices = @transform_2, window_bounds = array<i64: 1, 16>}, {transform_indices = @transform_3, window_bounds = array<i64: 8, 16>}]} {
    %c0 = arith.constant 0 : index
    %c0_0 = arith.constant 0 : index
    %0 = vector.load %arg1[%c0, %c0_0] : memref<8x32xf32, #tpu.memory_space<vmem>>, vector<8x32xf32>
    %c0_1 = arith.constant 0 : index
    %c0_2 = arith.constant 0 : index
    %1 = vector.load %arg2[%c0_1, %c0_2] : memref<32x16xf32, #tpu.memory_space<vmem>>, vector<32x16xf32>
    %cst = arith.constant dense<0.000000e+00> : vector<8x16xf32>
    %2 = tpu.matmul %0, %1, %cst {dimension_numbers = #tpu.dot_dimension_numbers<[1], [0], [0], [1], [0, 0, 1, 1], [], []>} : vector<8x32xf32>, vector<32x16xf32>, vector<8x16xf32> -> vector<8x16xf32>
    %c0_3 = arith.constant 0 : index
    %c0_4 = arith.constant 0 : index
    %3 = vector.load %arg3[%c0_3, %c0_4] : memref<1x16xf32, #tpu.memory_space<vmem>>, vector<1x16xf32>
    %4 = vector.broadcast %3 : vector<1x16xf32> to vector<8x16xf32>
    %5 = arith.addf %2, %4 : vector<8x16xf32>
    %c0_5 = arith.constant 0 : index
    %c0_6 = arith.constant 0 : index
    %6 = vector.load %arg4[%c0_5, %c0_6] : memref<8x16xf32, #tpu.memory_space<vmem>>, vector<8x16xf32>
    tpu.vector_store %arg4[%c0_5, %c0_6], %5 {strides = array<i32>} : memref<8x16xf32, #tpu.memory_space<vmem>>, vector<8x16xf32>,
    return
  }
  func.func @transform_0(%arg0: i32) -> (i32, i32) {
    %c0_i32 = arith.constant 0 : i32
    %c0_i32_0 = arith.constant 0 : i32
    return %arg0, %c0_i32 : i32, i32
  }
  func.func @transform_1(%arg0: i32) -> (i32, i32) {
    %c0_i32 = arith.constant 0 : i32
    %c0_i32_0 = arith.constant 0 : i32
    %c0_i32_1 = arith.constant 0 : i32
    return %c0_i32, %c0_i32_0 : i32, i32
  }
  func.func @transform_2(%arg0: i32) -> (i32, i32) {
    %c0_i32 = arith.constant 0 : i32
    %c0_i32_0 = arith.constant 0 : i32
    %c0_i32_1 = arith.constant 0 : i32
    return %c0_i32, %c0_i32_0 : i32, i32
  }
  func.func @transform_3(%arg0: i32) -> (i32, i32) {
    %c0_i32 = arith.constant 0 : i32
    %c0_i32_0 = arith.constant 0 : i32
    return %arg0, %c0_i32 : i32, i32
  }
}

</mosaic_0001>

<llo_original>
// kernel: encoder_forward.1
$region0: #{encoder_forward.1}
  #allocation0 [shape = 'u32[]', space=smem, size = 0x4, offset = 0x4, fixed_abs, tag = 'smem constant byte address 0x4 - core index']
  #allocation1 [shape = 'u32[144,128]{1,0:T(1,128)}', space=vmem, size = 0x12000, scoped, tag = 'internal scratch']
  %s0 = inlined_call_operand.vmem [shape: f32[8,32], index: 0, kind: input, shape index: {}]
  %s1 = inlined_call_operand.vmem [shape: f32[32,16], index: 1, kind: input, shape index: {}]
  %s2 = inlined_call_operand.vmem [shape: f32[1,16], index: 2, kind: input, shape index: {}]
  %s3 = inlined_call_operand.hbm [shape: f32[8,16], index: 3, kind: output, shape index: {}]
  %s4 = sld [smem:[#allocation0]]
  $region22: #{encoder_forward.1} parent=0
    _
  %s6 = ssub.s32 1, %s4
  %s7 = scalar_select 0, %s6, %s4
  $region1: #{encoder_forward.1} parent=0
    #allocation2 [shape = 'u8[4096]{0}', space=vmem, size = 0x1000, scoped, tag = 'output window, operand 0, single buffered']
    #allocation3 [shape = 's32[1]{0}', space=sflag, size = 0x4, scoped, tag = 'scoped memory for encoder_forward.1']
    %8 = vsyncpa [#allocation3], 0
    // Predicated region
    $region2: #{encoder_forward.1} parent=1 // pred_check
      _
    $region3: #{encoder_forward.1} parent=1 // pred_check_branch
      %10 = sbr.rel (0) target = $region5
    $region4: #{encoder_forward.1} parent=1 // pred_region
      _
    $region5: #{encoder_forward.1} parent=1 // pred_fallthru
      _
    // Predicated region
    $region6: #{encoder_forward.1} parent=1 // pred_check
      _
    $region7: #{encoder_forward.1} parent=1 // pred_check_branch
      %12 = sbr.rel (0) target = $region9
    $region8: #{encoder_forward.1} parent=1 // pred_region
      _
    $region9: #{encoder_forward.1} parent=1 // pred_fallthru
      _
    // Predicated region
    $region10: #{encoder_forward.1} parent=1 // pred_check
      _
    $region11: #{encoder_forward.1} parent=1 // pred_check_branch
      %14 = sbr.rel (0) target = $region13
    $region12: #{encoder_forward.1} parent=1 // pred_region
      _
    $region13: #{encoder_forward.1} parent=1 // pred_fallthru
      _
    %v15 = vld [vmem:[%s0] sm:$0xff]
    %v16 = vld [vmem:[%s1] sm:$0xff]
    %v17 = vld [vmem:[%s1 + $0x8] sm:$0xff]
    %v18 = vld [vmem:[%s1 + $0x10] sm:$0xff]
    %v19 = vld [vmem:[%s1 + $0x18] sm:$0xff]
    %v20 = vld [vmem:[%s2] sm:$0x1]
    %v22 = vlaneseq
    %v23 = vshrl.u32 %v22, 7
    %v24 = vsub.s32 0, %v23
    %v25 = vrot.slane %v20, %v24
    %vm27 = vcmask 261120
    %v29 = vsel %vm27, %v15, 0
    %31 = vmatprep.subr.mxu0 0.0
    %32 = vmatpush1.msra.mxu0 %v16
    %33 = vmatprep.subr.mxu0 0.0
    %34 = vmatpush1.msra.mxu0 %v17
    %35 = vmatprep.subr.mxu0 0.0
    %36 = vmatpush1.msra.mxu0 %v18
    %37 = vmatprep.subr.mxu0 0.0
    %38 = vmatpush1.msra.mxu0 %v19
    %39 = vmatprep.subr.mxu0 0.0
    %40 = vmatpush1.msra.mxu0 0.0
    %41 = vmatprep.subr.mxu0 0.0
    %42 = vmatpush1.msra.mxu0 0.0
    %43 = vmatprep.subr.mxu0 0.0
    %44 = vmatpush1.msra.mxu0 0.0
    %45 = vmatprep.subr.mxu0 0.0
    %46 = vmatpush1.msra.mxu0 0.0
    %47 = vmatprep.subr.mxu0 0.0
    %48 = vmatpush1.msra.mxu0 0.0
    %49 = vmatprep.subr.mxu0 0.0
    %50 = vmatpush1.msra.mxu0 0.0
    %51 = vmatprep.subr.mxu0 0.0
    %52 = vmatpush1.msra.mxu0 0.0
    %53 = vmatprep.subr.mxu0 0.0
    %54 = vmatpush1.msra.mxu0 0.0
    %55 = vmatprep.subr.mxu0 0.0
    %56 = vmatpush1.msra.mxu0 0.0
    %57 = vmatprep.subr.mxu0 0.0
    %58 = vmatpush1.msra.mxu0 0.0
    %59 = vmatprep.subr.mxu0 0.0
    %60 = vmatpush1.msra.mxu0 0.0
    %61 = vmatprep.subr.mxu0 0.0
    %62 = vmatpush1.msra.mxu0 0.0
    %63 = vmatprep.subr.mxu0 0.0
    %64 = vmatpush1.msra.mxu0 0.0
    %65 = vmatprep.subr.mxu0 0.0
    %66 = vmatpush1.msra.mxu0 0.0
    %67 = vmatprep.subr.mxu0 0.0
    %68 = vmatpush1.msra.mxu0 0.0
    %69 = vmatprep.subr.mxu0 0.0
    %70 = vmatpush1.msra.mxu0 0.0
    %71 = vmatprep.subr.mxu0 0.0
    %72 = vmatpush1.msra.mxu0 0.0
    %73 = vmatprep.subr.mxu0 0.0
    %74 = vmatpush1.msra.mxu0 0.0
    %75 = vmatprep.subr.mxu0 0.0
    %76 = vmatpush1.msra.mxu0 0.0
    %77 = vmatprep.subr.mxu0 0.0
    %78 = vmatpush1.msra.mxu0 0.0
    %79 = vmatprep.subr.mxu0 0.0
    %80 = vmatpush1.msra.mxu0 0.0
    %81 = vmatprep.subr.mxu0 0.0
    %82 = vmatpush1.msra.mxu0 0.0
    %83 = vmatprep.subr.mxu0 0.0
    %84 = vmatpush1.msra.mxu0 0.0
    %85 = vmatprep.subr.mxu0 0.0
    %86 = vmatpush1.msra.mxu0 0.0
    %87 = vmatprep.subr.mxu0 0.0
    %88 = vmatpush1.msra.mxu0 0.0
    %89 = vmatprep.subr.mxu0 0.0
    %90 = vmatpush1.msra.mxu0 0.0
    %91 = vmatprep.subr.mxu0 0.0
    %92 = vmatpush1.msra.mxu0 0.0
    %93 = vmatprep.subr.mxu0 0.0
    %94 = vmatpush1.msra.mxu0 0.0
    %95 = vmatprep.mubr.f32.mxu0 0.0
    %96 = vmatmul.mubr.f32.gmra.mrb[0].mxu0 %v29
    %v97 = vpop.f32.mrb[0].mxu0
    %v98 = vadd.f32 %v25, %v97
    %v99 = vpop.f32.mrb[0].mxu0
    %100 = vdwg.mxu0
    %vm101 = vcmask 130048
    %102 = vst.msk [vmem:[#allocation2] sm:$0xff] %vm101, %v98
    // Predicated region
    $region14: #{encoder_forward.1} parent=1 // pred_check
      _
    $region15: #{encoder_forward.1} parent=1 // pred_check_branch
      %104 = sbr.rel (0) target = $region17
    $region16: #{encoder_forward.1} parent=1 // pred_region
      %s106 = ssub.s32 128, 128
      %107 = vsyncadd [#allocation3], %s106
      %s109 = sshll.u32 [#allocation2], 4
      %s110 = int_to_ptr.vmem [resolvable:$true] %s109
      %112 = dma.vmem_to_hbm [thread:$0]  %s110, 128, %s3, [#allocation3]
    $region17: #{encoder_forward.1} parent=1 // pred_fallthru
      _
    // Predicated region
    $region18: #{encoder_forward.1} parent=1 // pred_check
      _
    $region19: #{encoder_forward.1} parent=1 // pred_check_branch
      %114 = sbr.rel (0) target = $region21
    $region20: #{encoder_forward.1} parent=1 // pred_region
      %115 = dma.done [#allocation3], 128
    $region21: #{encoder_forward.1} parent=1 // pred_fallthru
      _
    %116 = vsyncpa [#allocation3], 1

</llo_original>
